<compile_context>
chip_gen: v5e
topology: v5e:2x2
jax: 0.10.0
libtpu: 0.0.40
codegen_flags: <defaults>
</compile_context>

<pallas_src>
import functools
import math

import jax
import jax.numpy as jnp
from jax.experimental import pallas as pl
from jax.experimental.pallas import tpu as pltpu


# ---------------------------------------------------------------------------
# In-kernel helpers (all static-shape Python branching; only one path traces).
# ---------------------------------------------------------------------------
def _softmax_lastdim(x):
    m = jnp.max(x, axis=-1, keepdims=True)
    e = jnp.exp(x - m)                                   # EUP
    denom = jnp.sum(e, axis=-1, keepdims=True)
    return e * pl.reciprocal(denom, approx=True)         # EUP reciprocal, no divide


def _content_scores(mem, query, use_mxu):
    """scores[b, n] = sum_m mem[b, n, m] * query[b, m]."""
    if use_mxu:
        # Batched rank-3 matmul so Mosaic lowers it onto the MXU
        # (einsum 'bnm,bm->bn' written MXU-friendly).
        s3 = jnp.einsum("bnm,bkm->bnk", mem, query[:, None, :],
                        preferred_element_type=jnp.float32)   # [TB, N, 1]
        return jnp.sum(s3, axis=2)
    # Tiny / unaligned bank size: fused VPU multiply + lane reduce.
    return jnp.sum(mem * query[:, None, :], axis=2)


def _read_data(addr, mem, use_mxu):
    """data[b, m] = sum_n addr[b, n] * mem[b, n, m]."""
    if use_mxu:
        d3 = jnp.einsum("bkn,bnm->bkm", addr[:, None, :], mem,
                        preferred_element_type=jnp.float32)   # [TB, 1, M]
        return jnp.sum(d3, axis=1)
    return jnp.sum(addr[:, :, None] * mem, axis=1)


def _apply_circular_shift(interp, shift_dist, max_shift, N):
    """shifted[b, i] = sum_s shift_dist[b, s] * interp[b, (i + s - max_shift) % N]."""
    S = shift_dist.shape[-1]
    if N % 128 == 0:
        # Lane-aligned bank axis: per-offset XLU rotation + VPU FMA.
        shifted = None
        for s in range(S):                      # S is tiny & static -> unrolled
            sh = (max_shift - s) % N            # jnp.roll semantics: out[i] = x[(i - sh) % N]
            rolled = interp if sh == 0 else pltpu.roll(interp, shift=sh,
                                                       axis=interp.ndim - 1)
            term = shift_dist[:, s:s + 1] * rolled
            shifted = term if shifted is None else shifted + term
        return shifted

    # Small / unaligned N (e.g. the demo): contract against constant one-hot
    # circulants on the MXU.  No [B, N, N] broadcast intermediate and no
    # cross-lane reduce (the VPU/XLU hot spots of the previous version).
    j_mat = jax.lax.broadcasted_iota(jnp.int32, (N, N), 0)   # source bank index
    i_mat = jax.lax.broadcasted_iota(jnp.int32, (N, N), 1)   # destination bank index
    shifted = None
    for s in range(S):
        k = s - max_shift
        if k % N == 0:
            rolled = interp
        else:
            perm = (j_mat == (i_mat + k) % N).astype(interp.dtype)   # [N, N] constant
            rolled = jnp.dot(interp, perm, preferred_element_type=jnp.float32)
        term = shift_dist[:, s:s + 1] * rolled
        shifted = term if shifted is None else shifted + term
    return shifted


# ---------------------------------------------------------------------------
# Kernel
# ---------------------------------------------------------------------------
def read_head_kernel(x_ref, w_ref, b_ref, mem_ref, prev_ref,
                     data_ref, addr_ref, *, M, S, max_shift, N, use_mxu):
    x = x_ref[...]        # [TB, D]
    w = w_ref[...]        # [D, A]   (resident across the batch grid)
    b = b_ref[...]        # [1, A]
    mem = mem_ref[...]    # [TB, N, M]
    prev = prev_ref[...]  # [TB, N]

    # Linear "arguments" layer on the MXU.
    args = jnp.dot(x, w, preferred_element_type=jnp.float32) + b    # [TB, A]

    query = args[:, :M]                           # [TB, M]
    gate_logit = args[:, M:M + 1]                 # [TB, 1]
    shift_logits = args[:, M + 1:M + 1 + S]       # [TB, S]

    # Sigmoid gate + shift softmax: exp/reciprocal live on the EUP.
    gate = pl.reciprocal(1.0 + jnp.exp(-gate_logit), approx=True)   # [TB, 1]
    shift_dist = _softmax_lastdim(shift_logits)                     # [TB, S]

    # Content-based addressing (scaled dot product over the bank contents).
    scores = _content_scores(mem, query, use_mxu) * (1.0 / math.sqrt(M))
    content = _softmax_lastdim(scores)                              # [TB, N]

    # Gated interpolation with the previous addressing.
    interp = gate * content + (1.0 - gate) * prev                   # [TB, N]

    # Circular shift over the bank axis.
    shifted = _apply_circular_shift(interp, shift_dist, max_shift, N)

    addr_ref[...] = shifted
    data_ref[...] = _read_data(shifted, mem, use_mxu)               # [TB, M]


# ---------------------------------------------------------------------------
# Wrapper
# ---------------------------------------------------------------------------
def _pick_batch_tile(B, N, M, itemsize=4, target_block_bytes=8 << 20):
    """Largest multiple-of-8 batch tile whose [TB, N, M] block stays under
    ~8 MiB per pipeline buffer (double-buffered this fits easily inside v7x's
    64 MiB VMEM; v6e/v5e have even more headroom)."""
    if B <= 8:
        return B
    per_row = max(1, N * M * itemsize)
    tb = min(B, max(8, (target_block_bytes // per_row) // 8 * 8))
    while tb > 8 and B % tb:
        tb -= 8
    return tb if B % tb == 0 else B


def read_head_forward(x, w, b, memory, prev_addr, *, max_shift, batch_tile=None):
    B, D = x.shape
    Bm, N, M = memory.shape
    S = 2 * max_shift + 1
    A = M + 1 + S
    assert Bm == B and w.shape == (D, A) and b.shape == (A,)
    assert prev_addr.shape == (B, N)

    TB = _pick_batch_tile(B, N, M) if batch_tile is None else batch_tile
    assert B % TB == 0 and (TB == B or TB % 8 == 0)

    # Use the MXU einsum paths only when the contraction tiles cleanly onto the
    # MXU; tiny bank shapes (like the demo) keep the fused VPU path.
    use_mxu = (M % 128 == 0) and (N % 8 == 0)

    kernel = functools.partial(read_head_kernel, M=M, S=S, max_shift=max_shift,
                               N=N, use_mxu=use_mxu)

    flops = 2 * B * (D * A + 2 * N * M + S * N) + 8 * B * N
    transcendentals = B * (N + S + 4)
    bytes_accessed = 4 * (B * (D + N * M + 2 * N + M) + D * A + A)

    data, addressing = pl.pallas_call(
        kernel,
        grid=(B // TB,),
        in_specs=[
            pl.BlockSpec((TB, D), lambda i: (i, 0)),        # x        (batch-tiled)
            pl.BlockSpec((D, A), lambda i: (0, 0)),         # weights  (resident)
            pl.BlockSpec((1, A), lambda i: (0, 0)),         # bias     (resident)
            pl.BlockSpec((TB, N, M), lambda i: (i, 0, 0)),  # memory   (batch-tiled)
            pl.BlockSpec((TB, N), lambda i: (i, 0)),        # prev addressing
        ],
        out_specs=(
            pl.BlockSpec((TB, M), lambda i: (i, 0)),        # data
            pl.BlockSpec((TB, N), lambda i: (i, 0)),        # addressing
        ),
        out_shape=(jax.ShapeDtypeStruct((B, M), jnp.float32),
                   jax.ShapeDtypeStruct((B, N), jnp.float32)),
        compiler_params=pltpu.CompilerParams(
            dimension_semantics=("parallel",),   # megacore / 2-TC sharding on v7x
            vmem_limit_bytes=32 * 1024 * 1024,   # tile picker keeps us well under this
        ),
        cost_estimate=pl.CostEstimate(flops=flops,
                                      transcendentals=transcendentals,
                                      bytes_accessed=bytes_accessed),
    )(x, w, b.reshape(1, A), memory, prev_addr)
    return data, addressing


# ---------------------------------------------------------------------------
# Pure-JAX reference mirroring the PyTorch forward, for validation.
# ---------------------------------------------------------------------------
def read_head_reference(x, w, b, memory, prev_addr, *, max_shift):
    B, D = x.shape
    _, N, M = memory.shape
    S = 2 * max_shift + 1
    args = x @ w + b
    query = args[:, :M]
    gate = jax.nn.sigmoid(args[:, M:M + 1])
    shift = jax.nn.softmax(args[:, M + 1:M + 1 + S], axis=1)
    content = jax.nn.softmax(
        jnp.einsum("bnm,bm->bn", memory, query) / math.sqrt(M), axis=1)
    interp = gate * content + (1.0 - gate) * prev_addr
    idx_table = (jnp.arange(N)[:, None] +
                 (jnp.arange(S) - max_shift)[None, :]) % N           # [N, S]
    shifted = jnp.sum(shift[:, None, :] * interp[:, idx_table], axis=2)
    data = jnp.einsum("bn,bnm->bm", shifted, memory)
    return data, shifted


if __name__ == "__main__":
    # Small, deterministic example shapes (two grid steps with batch_tile=8).
    B = 16           # batch
    D = 32           # input_size
    max_shift = 1    # -> 3 shift offsets
    M = 16           # memory_bank_size
    N = 16           # num_memory_banks
    A = M + 1 + (2 * max_shift + 1)

    key = jax.random.PRNGKey(0)
    k_x, k_m, k_p, k_w, k_b = jax.random.split(key, 5)

    x = jax.random.normal(k_x, (B, D), dtype=jnp.float32)
    memory = jax.random.normal(k_m, (B, N, M), dtype=jnp.float32)
    prev_addr = jax.nn.softmax(
        jax.random.normal(k_p, (B, N), dtype=jnp.float32), axis=1)

    # Deterministic nn.Linear-style init (uniform +-1/sqrt(fan_in)).
    bound = 1.0 / math.sqrt(D)
    w = jax.random.uniform(k_w, (D, A), minval=-bound, maxval=bound,
                           dtype=jnp.float32)
    b = jax.random.uniform(k_b, (A,), minval=-bound, maxval=bound,
                           dtype=jnp.float32)

    data, addressing = read_head_forward(x, w, b, memory, prev_addr,
                                         max_shift=max_shift, batch_tile=8)
    jax.block_until_ready((data, addressing))

    data_ref, addr_ref = read_head_reference(x, w, b, memory, prev_addr,
                                             max_shift=max_shift)
    assert data.shape == (B, M) and addressing.shape == (B, N)
    # approx=True EUP reciprocals in sigmoid / softmax denominators introduce
    # ~1e-4 relative error, hence the slightly relaxed tolerance.
    assert jnp.allclose(data, data_ref, atol=3e-3, rtol=3e-3)
    assert jnp.allclose(addressing, addr_ref, atol=3e-3, rtol=3e-3)

    print("KERNEL_OK")
</pallas_src>

<mosaic_0001>
module attributes {stable_mosaic.version = 11 : i64} {
  func.func @read_head_kernel(%arg0: i32, %arg1: memref<8x32xf32, #tpu.memory_space<vmem>>, %arg2: memref<32x20xf32, #tpu.memory_space<vmem>>, %arg3: memref<1x20xf32, #tpu.memory_space<vmem>>, %arg4: memref<8x16x16xf32, #tpu.memory_space<vmem>>, %arg5: memref<8x16xf32, #tpu.memory_space<vmem>>, %arg6: memref<8x16xf32, #tpu.memory_space<vmem>>, %arg7: memref<8x16xf32, #tpu.memory_space<vmem>>) attributes {dimension_semantics = [#tpu.dimension_semantics<parallel>], iteration_bounds = array<i64: 2>, scalar_prefetch = 0 : i64, scratch_operands = 0 : i64, tpu.core_type = #tpu.core_type<tc>, window_params = [{transform_indices = @transform_0, window_bounds = array<i64: 8, 32>}, {pipeline_mode = #tpu.pipeline_mode<synchronous>, transform_indices = @transform_1, window_bounds = array<i64: 32, 20>}, {pipeline_mode = #tpu.pipeline_mode<synchronous>, transform_indices = @transform_2, window_bounds = array<i64: 1, 20>}, {transform_indices = @transform_3, window_bounds = array<i64: 8, 16, 16>}, {transform_indices = @transform_4, window_bounds = array<i64: 8, 16>}, {transform_indices = @transform_5, window_bounds = array<i64: 8, 16>}, {transform_indices = @transform_6, window_bounds = array<i64: 8, 16>}]} {
    %c0 = arith.constant 0 : index
    %c0_0 = arith.constant 0 : index
    %0 = vector.load %arg1[%c0, %c0_0] : memref<8x32xf32, #tpu.memory_space<vmem>>, vector<8x32xf32>
    %c0_1 = arith.constant 0 : index
    %c0_2 = arith.constant 0 : index
    %1 = vector.load %arg2[%c0_1, %c0_2] : memref<32x20xf32, #tpu.memory_space<vmem>>, vector<32x20xf32>
    %c0_3 = arith.constant 0 : index
    %c0_4 = arith.constant 0 : index
    %2 = vector.load %arg3[%c0_3, %c0_4] : memref<1x20xf32, #tpu.memory_space<vmem>>, vector<1x20xf32>
    %c0_5 = arith.constant 0 : index
    %c0_6 = arith.constant 0 : index
    %c0_7 = arith.constant 0 : index
    %3 = vector.load %arg4[%c0_5, %c0_6, %c0_7] : memref<8x16x16xf32, #tpu.memory_space<vmem>>, vector<8x16x16xf32>
    %c0_8 = arith.constant 0 : index
    %c0_9 = arith.constant 0 : index
    %4 = vector.load %arg5[%c0_8, %c0_9] : memref<8x16xf32, #tpu.memory_space<vmem>>, vector<8x16xf32>
    %cst = arith.constant dense<0.000000e+00> : vector<8x20xf32>
    %5 = tpu.matmul %0, %1, %cst {dimension_numbers = #tpu.dot_dimension_numbers<[1], [0], [0], [1], [0, 0, 1, 1], [], []>} : vector<8x32xf32>, vector<32x20xf32>, vector<8x20xf32> -> vector<8x20xf32>
    %6 = vector.broadcast %2 : vector<1x20xf32> to vector<8x20xf32>
    %7 = arith.addf %5, %6 : vector<8x20xf32>
    %8 = vector.extract_strided_slice %7 {offsets = [0, 0], sizes = [8, 16], strides = [1, 1]} : vector<8x20xf32> to vector<8x16xf32>
    %9 = vector.extract_strided_slice %7 {offsets = [0, 16], sizes = [8, 1], strides = [1, 1]} : vector<8x20xf32> to vector<8x1xf32>
    %10 = vector.extract_strided_slice %7 {offsets = [0, 17], sizes = [8, 3], strides = [1, 1]} : vector<8x20xf32> to vector<8x3xf32>
    %cst_10 = arith.constant 0.000000e+00 : f32
    %11 = vector.broadcast %cst_10 : f32 to vector<8x1xf32>
    %12 = arith.subf %11, %9 : vector<8x1xf32>
    %13 = math.exp %12 : vector<8x1xf32>
    %cst_11 = arith.constant 1.000000e+00 : f32
    %14 = vector.broadcast %cst_11 : f32 to vector<8x1xf32>
    %15 = arith.addf %14, %13 : vector<8x1xf32>
    %16 = tpu.reciprocal %15 {approx = true} : vector<8x1xf32> -> vector<8x1xf32>
    %cst_12 = arith.constant dense<0xFF800000> : vector<8xf32>
    %17 = vector.multi_reduction <maximumf>, %10, %cst_12 [1] : vector<8x3xf32> to vector<8xf32>
    %18 = vector.shape_cast %17 : vector<8xf32> to vector<8x1xf32>
    %19 = vector.broadcast %18 : vector<8x1xf32> to vector<8x3xf32>
    %20 = arith.subf %10, %19 : vector<8x3xf32>
    %21 = math.exp %20 : vector<8x3xf32>
    %cst_13 = arith.constant dense<0.000000e+00> : vector<8xf32>
    %22 = vector.multi_reduction <add>, %21, %cst_13 [1] : vector<8x3xf32> to vector<8xf32>
    %23 = vector.shape_cast %22 : vector<8xf32> to vector<8x1xf32>
    %24 = tpu.reciprocal %23 {approx = true} : vector<8x1xf32> -> vector<8x1xf32>
    %25 = vector.broadcast %24 : vector<8x1xf32> to vector<8x3xf32>
    %26 = arith.mulf %21, %25 : vector<8x3xf32>
    %27 = vector.shape_cast %8 : vector<8x16xf32> to vector<8x1x16xf32>
    %28 = vector.broadcast %27 : vector<8x1x16xf32> to vector<8x16x16xf32>
    %29 = arith.mulf %3, %28 : vector<8x16x16xf32>
    %cst_14 = arith.constant dense<0.000000e+00> : vector<8x16xf32>
    %30 = vector.multi_reduction <add>, %29, %cst_14 [2] : vector<8x16x16xf32> to vector<8x16xf32>
    %cst_15 = arith.constant 2.500000e-01 : f32
    %31 = vector.broadcast %cst_15 : f32 to vector<8x16xf32>
    %32 = arith.mulf %30, %31 : vector<8x16xf32>
    %cst_16 = arith.constant dense<0xFF800000> : vector<8xf32>
    %33 = vector.multi_reduction <maximumf>, %32, %cst_16 [1] : vector<8x16xf32> to vector<8xf32>
    %34 = vector.shape_cast %33 : vector<8xf32> to vector<8x1xf32>
    %35 = vector.broadcast %34 : vector<8x1xf32> to vector<8x16xf32>
    %36 = arith.subf %32, %35 : vector<8x16xf32>
    %37 = math.exp %36 : vector<8x16xf32>
    %cst_17 = arith.constant dense<0.000000e+00> : vector<8xf32>
    %38 = vector.multi_reduction <add>, %37, %cst_17 [1] : vector<8x16xf32> to vector<8xf32>
    %39 = vector.shape_cast %38 : vector<8xf32> to vector<8x1xf32>
    %40 = tpu.reciprocal %39 {approx = true} : vector<8x1xf32> -> vector<8x1xf32>
    %41 = vector.broadcast %40 : vector<8x1xf32> to vector<8x16xf32>
    %42 = arith.mulf %37, %41 : vector<8x16xf32>
    %43 = vector.broadcast %16 : vector<8x1xf32> to vector<8x16xf32>
    %44 = arith.mulf %43, %42 : vector<8x16xf32>
    %cst_18 = arith.constant 1.000000e+00 : f32
    %45 = vector.broadcast %cst_18 : f32 to vector<8x1xf32>
    %46 = arith.subf %45, %16 : vector<8x1xf32>
    %47 = vector.broadcast %46 : vector<8x1xf32> to vector<8x16xf32>
    %48 = arith.mulf %47, %4 : vector<8x16xf32>
    %49 = arith.addf %44, %48 : vector<8x16xf32>
    %50 = tpu.iota {dimensions = array<i32: 0>} : vector<16x16xi32>
    %51 = tpu.iota {dimensions = array<i32: 1>} : vector<16x16xi32>
    %c-1_i32 = arith.constant -1 : i32
    %52 = vector.broadcast %c-1_i32 : i32 to vector<16x16xi32>
    %53 = arith.addi %51, %52 : vector<16x16xi32>
    %c16_i32 = arith.constant 16 : i32
    %c0_i32 = arith.constant 0 : i32
    %54 = arith.cmpi eq, %c16_i32, %c0_i32 : i32
    %c1_i32 = arith.constant 1 : i32
    %55 = arith.select %54, %c1_i32, %c16_i32 : i32
    %56 = vector.broadcast %55 : i32 to vector<16x16xi32>
    %57 = arith.remsi %53, %56 : vector<16x16xi32>
    %c0_i32_19 = arith.constant 0 : i32
    %58 = vector.broadcast %c0_i32_19 : i32 to vector<16x16xi32>
    %59 = arith.cmpi ne, %57, %58 : vector<16x16xi32>
    %c0_i32_20 = arith.constant 0 : i32
    %60 = vector.broadcast %c0_i32_20 : i32 to vector<16x16xi32>
    %61 = arith.cmpi slt, %57, %60 : vector<16x16xi32>
    %c0_i32_21 = arith.constant 0 : i32
    %62 = arith.cmpi slt, %55, %c0_i32_21 : i32
    %63 = vector.broadcast %62 : i1 to vector<16x16xi1>
    %64 = vector.broadcast %63 : vector<16x16xi1> to vector<16x16xi1>
    %65 = arith.xori %61, %64 : vector<16x16xi1>
    %66 = arith.andi %65, %59 : vector<16x16xi1>
    %67 = vector.broadcast %55 : i32 to vector<16x16xi32>
    %68 = arith.addi %57, %67 : vector<16x16xi32>
    %69 = arith.select %66, %68, %57 : vector<16x16xi1>, vector<16x16xi32>
    %70 = arith.cmpi eq, %50, %69 : vector<16x16xi32>
    %71 = arith.extui %70 : vector<16x16xi1> to vector<16x16xi32>
    %72 = arith.sitofp %71 : vector<16x16xi32> to vector<16x16xf32>
    %cst_22 = arith.constant dense<0.000000e+00> : vector<8x16xf32>
    %73 = tpu.matmul %49, %72, %cst_22 {dimension_numbers = #tpu.dot_dimension_numbers<[1], [0], [0], [1], [0, 0, 1, 1], [], []>} : vector<8x16xf32>, vector<16x16xf32>, vector<8x16xf32> -> vector<8x16xf32>
    %74 = vector.extract_strided_slice %26 {offsets = [0, 0], sizes = [8, 1], strides = [1, 1]} : vector<8x3xf32> to vector<8x1xf32>
    %75 = vector.broadcast %74 : vector<8x1xf32> to vector<8x16xf32>
    %76 = arith.mulf %75, %73 : vector<8x16xf32>
    %77 = vector.extract_strided_slice %26 {offsets = [0, 1], sizes = [8, 1], strides = [1, 1]} : vector<8x3xf32> to vector<8x1xf32>
    %78 = vector.broadcast %77 : vector<8x1xf32> to vector<8x16xf32>
    %79 = arith.mulf %78, %49 : vector<8x16xf32>
    %80 = arith.addf %76, %79 : vector<8x16xf32>
    %c1_i32_23 = arith.constant 1 : i32
    %81 = vector.broadcast %c1_i32_23 : i32 to vector<16x16xi32>
    %82 = arith.addi %51, %81 : vector<16x16xi32>
    %c16_i32_24 = arith.constant 16 : i32
    %c0_i32_25 = arith.constant 0 : i32
    %83 = arith.cmpi eq, %c16_i32_24, %c0_i32_25 : i32
    %c1_i32_26 = arith.constant 1 : i32
    %84 = arith.select %83, %c1_i32_26, %c16_i32_24 : i32
    %85 = vector.broadcast %84 : i32 to vector<16x16xi32>
    %86 = arith.remsi %82, %85 : vector<16x16xi32>
    %c0_i32_27 = arith.constant 0 : i32
    %87 = vector.broadcast %c0_i32_27 : i32 to vector<16x16xi32>
    %88 = arith.cmpi ne, %86, %87 : vector<16x16xi32>
    %c0_i32_28 = arith.constant 0 : i32
    %89 = vector.broadcast %c0_i32_28 : i32 to vector<16x16xi32>
    %90 = arith.cmpi slt, %86, %89 : vector<16x16xi32>
    %c0_i32_29 = arith.constant 0 : i32
    %91 = arith.cmpi slt, %84, %c0_i32_29 : i32
    %92 = vector.broadcast %91 : i1 to vector<16x16xi1>
    %93 = vector.broadcast %92 : vector<16x16xi1> to vector<16x16xi1>
    %94 = arith.xori %90, %93 : vector<16x16xi1>
    %95 = arith.andi %94, %88 : vector<16x16xi1>
    %96 = vector.broadcast %84 : i32 to vector<16x16xi32>
    %97 = arith.addi %86, %96 : vector<16x16xi32>
    %98 = arith.select %95, %97, %86 : vector<16x16xi1>, vector<16x16xi32>
    %99 = arith.cmpi eq, %50, %98 : vector<16x16xi32>
    %100 = arith.extui %99 : vector<16x16xi1> to vector<16x16xi32>
    %101 = arith.sitofp %100 : vector<16x16xi32> to vector<16x16xf32>
    %cst_30 = arith.constant dense<0.000000e+00> : vector<8x16xf32>
    %102 = tpu.matmul %49, %101, %cst_30 {dimension_numbers = #tpu.dot_dimension_numbers<[1], [0], [0], [1], [0, 0, 1, 1], [], []>} : vector<8x16xf32>, vector<16x16xf32>, vector<8x16xf32> -> vector<8x16xf32>
    %103 = vector.extract_strided_slice %26 {offsets = [0, 2], sizes = [8, 1], strides = [1, 1]} : vector<8x3xf32> to vector<8x1xf32>
    %104 = vector.broadcast %103 : vector<8x1xf32> to vector<8x16xf32>
    %105 = arith.mulf %104, %102 : vector<8x16xf32>
    %106 = arith.addf %80, %105 : vector<8x16xf32>
    %c0_31 = arith.constant 0 : index
    %c0_32 = arith.constant 0 : index
    %107 = vector.load %arg7[%c0_31, %c0_32] : memref<8x16xf32, #tpu.memory_space<vmem>>, vector<8x16xf32>
    tpu.vector_store %arg7[%c0_31, %c0_32], %106 {strides = array<i32>} : memref<8x16xf32, #tpu.memory_space<vmem>>, vector<8x16xf32>,
    %108 = vector.shape_cast %106 : vector<8x16xf32> to vector<8x16x1xf32>
    %109 = vector.broadcast %108 : vector<8x16x1xf32> to vector<8x16x16xf32>
    %110 = arith.mulf %109, %3 : vector<8x16x16xf32>
    %cst_33 = arith.constant dense<0.000000e+00> : vector<8x16xf32>
    %111 = vector.multi_reduction <add>, %110, %cst_33 [1] : vector<8x16x16xf32> to vector<8x16xf32>
    %c0_34 = arith.constant 0 : index
    %c0_35 = arith.constant 0 : index
    %112 = vector.load %arg6[%c0_34, %c0_35] : memref<8x16xf32, #tpu.memory_space<vmem>>, vector<8x16xf32>
    tpu.vector_store %arg6[%c0_34, %c0_35], %111 {strides = array<i32>} : memref<8x16xf32, #tpu.memory_space<vmem>>, vector<8x16xf32>,
    return
  }
  func.func @transform_0(%arg0: i32) -> (i32, i32) {
    %c0_i32 = arith.constant 0 : i32
    %c0_i32_0 = arith.constant 0 : i32
    return %arg0, %c0_i32 : i32, i32
  }
  func.func @transform_1(%arg0: i32) -> (i32, i32) {
    %c0_i32 = arith.constant 0 : i32
    %c0_i32_0 = arith.constant 0 : i32
    %c0_i32_1 = arith.constant 0 : i32
    return %c0_i32, %c0_i32_0 : i32, i32
  }
  func.func @transform_2(%arg0: i32) -> (i32, i32) {
    %c0_i32 = arith.constant 0 : i32
    %c0_i32_0 = arith.constant 0 : i32
    %c0_i32_1 = arith.constant 0 : i32
    return %c0_i32, %c0_i32_0 : i32, i32
  }
  func.func @transform_3(%arg0: i32) -> (i32, i32, i32) {
    %c0_i32 = arith.constant 0 : i32
    %c0_i32_0 = arith.constant 0 : i32
    %c0_i32_1 = arith.constant 0 : i32
    return %arg0, %c0_i32, %c0_i32_0 : i32, i32, i32
  }
  func.func @transform_4(%arg0: i32) -> (i32, i32) {
    %c0_i32 = arith.constant 0 : i32
    %c0_i32_0 = arith.constant 0 : i32
    return %arg0, %c0_i32 : i32, i32
  }
  func.func @transform_5(%arg0: i32) -> (i32, i32) {
    %c0_i32 = arith.constant 0 : i32
    %c0_i32_0 = arith.constant 0 : i32
    return %arg0, %c0_i32 : i32, i32
  }
  func.func @transform_6(%arg0: i32) -> (i32, i32) {
    %c0_i32 = arith.constant 0 : i32
    %c0_i32_0 = arith.constant 0 : i32
    return %arg0, %c0_i32 : i32, i32
  }
}

</mosaic_0001>

<llo_original>
// kernel: tpu_custom_call.1
$region0: #{tpu_custom_call.1}
  #allocation0 [shape = 'u32[]', space=smem, size = 0x4, offset = 0x4, fixed_abs, tag = 'smem constant byte address 0x4 - core index']
  #allocation1 [shape = 'u32[72,128]{1,0:T(1,128)}', space=vmem, size = 0x9000, scoped, tag = 'internal scratch']
  %s0 = inlined_call_operand.vmem [shape: f32[16,32], index: 0, kind: input, shape index: {}]
  %s1 = inlined_call_operand.vmem [shape: f32[32,20], index: 1, kind: input, shape index: {}]
  %s2 = inlined_call_operand.vmem [shape: f32[1,20], index: 2, kind: input, shape index: {}]
  %s3 = inlined_call_operand.hbm [shape: f32[16,16,16], index: 3, kind: input, shape index: {}]
  %s4 = inlined_call_operand.vmem [shape: f32[16,16], index: 4, kind: input, shape index: {}]
  %s5 = inlined_call_operand.hbm [shape: f32[16,16], index: 5, kind: output, shape index: {0}]
  %s6 = inlined_call_operand.hbm [shape: f32[16,16], index: 6, kind: output, shape index: {1}]
  %7 = xla_tuple %s5, %s6
  %s8 = sld [smem:[#allocation0]]
  $region65: #{tpu_custom_call.1} parent=0
    _
  %s10 = ssub.s32 1, %s8
  %s11 = scalar_select 0, %s10, %s8
  $region1: #{tpu_custom_call.1} parent=0
    #allocation2 [shape = 'u8[131072]{0}', space=vmem, size = 0x20000, scoped, tag = 'input window, operand 3']
    #allocation3 [shape = 's32[2]{0}', space=sflag, size = 0x8, scoped, tag = 'scoped memory for tpu_custom_call.1']
    #allocation4 [shape = 's32[2]{0}', space=sflag, size = 0x8, scoped, tag = 'scoped memory for tpu_custom_call.1']
    #allocation5 [shape = 'u8[8192]{0}', space=vmem, size = 0x2000, scoped, tag = 'output window, operand 0']
    #allocation6 [shape = 'u8[8192]{0}', space=vmem, size = 0x2000, scoped, tag = 'output window, operand 1']
    #allocation7 [shape = 's32[2]{0}', space=sflag, size = 0x8, scoped, tag = 'scoped memory for tpu_custom_call.1']
    %12 = vsyncpa [#allocation3], 0
    %s13 = scalar_lea.sflag [#allocation3], 1
    %14 = vsyncpa %s13, 0
    %15 = vsyncpa [#allocation4], 0
    %s16 = scalar_lea.sflag [#allocation4], 1
    %17 = vsyncpa %s16, 0
    %18 = vsyncpa [#allocation7], 0
    %s19 = scalar_lea.sflag [#allocation7], 1
    %20 = vsyncpa %s19, 0
    loop: start=0, step=1, limit=4
    $region2: #{tpu_custom_call.1} parent=1 // loop_pre_header
      _
    $region3: #{tpu_custom_call.1} parent=1 // loop_header
      %s22 = sphi 0, %s26
      %p23 = scmp.ge.s32.totalorder %s22, 4
      %s32 = sphi 0, %s34
      %s35 = sphi 0, %s32
      %s36 = sphi 0, %s35
      %s52 = sphi 0, %s36
      %s56 = sphi 0, %s56
      %s58 = sphi 0, %s56
      %s59 = sphi 0, %s58
      %s73 = sphi 0, %s59
      %s77 = sphi 0, %s77
      %s79 = sphi 0, %s77
      %s80 = sphi 0, %s79
      %s94 = sphi 0, %s80
      %s100 = sphi 0, %s102
      %s103 = sphi 0, %s100
      %s104 = sphi 0, %s103
      %s120 = sphi 0, %s104
      %s126 = sphi 0, %s128
      %s129 = sphi 0, %s126
      %s130 = sphi 0, %s129
      %s146 = sphi 0, %s130
      %s152 = sphi 0, %s154
      %s155 = sphi 0, %s152
      %s156 = sphi 0, %s155
      %s172 = sphi 0, %s156
      %s178 = sphi 0, %s180
      %s181 = sphi 0, %s178
      %s182 = sphi 0, %s181
      %s198 = sphi 0, %s182
    $region4: #{tpu_custom_call.1} parent=1 // loop_header_branch
      %25 = sbr.rel (%p23) target = $region8
    $region5: #{tpu_custom_call.1} parent=1 // loop_body
      %s27 = ssub.s32 %s22, 1
      %s28 = ssub.s32 %s22, 2
      %s29 = sadd.s32 %s22, 1
      %s30 = ssub.s32 %s22, %s29
      %p31 = scmp.eq.s32.totalorder %s30, 0
      %s33 = sadd.s32 %s32, 1
      %s34 = scalar_select %p31, %s32, %s33
      %p37 = pneg %p31
      %p38 = scmp.eq.s32.totalorder %s22, 1
      %p39 = por %p37, %p38
      %p40 = scmp.ne.s32.totalorder %s32, %s35
      %p41 = scmp.eq.s32.totalorder %s22, 0
      %p42 = por %p40, %p41
      %p43 = scmp.ne.s32.totalorder %s32, %s35
      %p44 = scmp.eq.s32.totalorder %s27, 1
      %p45 = por %p43, %p44
      %p46 = scmp.ne.s32.totalorder %s35, %s36
      %p47 = scmp.eq.s32.totalorder %s27, 0
      %p48 = por %p46, %p47
      %p49 = scmp.ne.s32.totalorder %s35, %s36
      %p50 = scmp.eq.s32.totalorder %s28, 1
      %p51 = por %p49, %p50
      %p53 = scmp.ne.s32.totalorder %s36, %s52
      %p54 = scmp.eq.s32.totalorder %s28, 0
      %p55 = por %p53, %p54
      %s57 = sadd.s32 %s56, 1
      %p60 = scmp.eq.s32.totalorder %s22, 1
      %p61 = scmp.ne.s32.totalorder %s56, %s58
      %p62 = scmp.eq.s32.totalorder %s22, 0
      %p63 = por %p61, %p62
      %p64 = scmp.ne.s32.totalorder %s56, %s58
      %p65 = scmp.eq.s32.totalorder %s27, 1
      %p66 = por %p64, %p65
      %p67 = scmp.ne.s32.totalorder %s58, %s59
      %p68 = scmp.eq.s32.totalorder %s27, 0
      %p69 = por %p67, %p68
      %p70 = scmp.ne.s32.totalorder %s58, %s59
      %p71 = scmp.eq.s32.totalorder %s28, 1
      %p72 = por %p70, %p71
      %p74 = scmp.ne.s32.totalorder %s59, %s73
      %p75 = scmp.eq.s32.totalorder %s28, 0
      %p76 = por %p74, %p75
      %s78 = sadd.s32 %s77, 1
      %p81 = scmp.eq.s32.totalorder %s22, 1
      %p82 = scmp.ne.s32.totalorder %s77, %s79
      %p83 = scmp.eq.s32.totalorder %s22, 0
      %p84 = por %p82, %p83
      %p85 = scmp.ne.s32.totalorder %s77, %s79
      %p86 = scmp.eq.s32.totalorder %s27, 1
      %p87 = por %p85, %p86
      %p88 = scmp.ne.s32.totalorder %s79, %s80
      %p89 = scmp.eq.s32.totalorder %s27, 0
      %p90 = por %p88, %p89
      %p91 = scmp.ne.s32.totalorder %s79, %s80
      %p92 = scmp.eq.s32.totalorder %s28, 1
      %p93 = por %p91, %p92
      %p95 = scmp.ne.s32.totalorder %s80, %s94
      %p96 = scmp.eq.s32.totalorder %s28, 0
      %p97 = por %p95, %p96
      %s98 = ssub.s32 %s22, %s29
      %p99 = scmp.eq.s32.totalorder %s98, 0
      %s101 = sadd.s32 %s100, 1
      %s102 = scalar_select %p99, %s100, %s101
      %p105 = pneg %p99
      %p106 = scmp.eq.s32.totalorder %s22, 1
      %p107 = por %p105, %p106
      %p108 = scmp.ne.s32.totalorder %s100, %s103
      %p109 = scmp.eq.s32.totalorder %s22, 0
      %p110 = por %p108, %p109
      %p111 = scmp.ne.s32.totalorder %s100, %s103
      %p112 = scmp.eq.s32.totalorder %s27, 1
      %p113 = por %p111, %p112
      %p114 = scmp.ne.s32.totalorder %s103, %s104
      %p115 = scmp.eq.s32.totalorder %s27, 0
      %p116 = por %p114, %p115
      %p117 = scmp.ne.s32.totalorder %s103, %s104
      %p118 = scmp.eq.s32.totalorder %s28, 1
      %p119 = por %p117, %p118
      %p121 = scmp.ne.s32.totalorder %s104, %s120
      %p122 = scmp.eq.s32.totalorder %s28, 0
      %p123 = por %p121, %p122
      %s124 = ssub.s32 %s22, %s29
      %p125 = scmp.eq.s32.totalorder %s124, 0
      %s127 = sadd.s32 %s126, 1
      %s128 = scalar_select %p125, %s126, %s127
      %p131 = pneg %p125
      %p132 = scmp.eq.s32.totalorder %s22, 1
      %p133 = por %p131, %p132
      %p134 = scmp.ne.s32.totalorder %s126, %s129
      %p135 = scmp.eq.s32.totalorder %s22, 0
      %p136 = por %p134, %p135
      %p137 = scmp.ne.s32.totalorder %s126, %s129
      %p138 = scmp.eq.s32.totalorder %s27, 1
      %p139 = por %p137, %p138
      %p140 = scmp.ne.s32.totalorder %s129, %s130
      %p141 = scmp.eq.s32.totalorder %s27, 0
      %p142 = por %p140, %p141
      %p143 = scmp.ne.s32.totalorder %s129, %s130
      %p144 = scmp.eq.s32.totalorder %s28, 1
      %p145 = por %p143, %p144
      %p147 = scmp.ne.s32.totalorder %s130, %s146
      %p148 = scmp.eq.s32.totalorder %s28, 0
      %p149 = por %p147, %p148
      %s150 = ssub.s32 %s22, %s29
      %p151 = scmp.eq.s32.totalorder %s150, 0
      %s153 = sadd.s32 %s152, 1
      %s154 = scalar_select %p151, %s152, %s153
      %p157 = pneg %p151
      %p158 = scmp.eq.s32.totalorder %s22, 1
      %p159 = por %p157, %p158
      %p160 = scmp.ne.s32.totalorder %s152, %s155
      %p161 = scmp.eq.s32.totalorder %s22, 0
      %p162 = por %p160, %p161
      %p163 = scmp.ne.s32.totalorder %s152, %s155
      %p164 = scmp.eq.s32.totalorder %s27, 1
      %p165 = por %p163, %p164
      %p166 = scmp.ne.s32.totalorder %s155, %s156
      %p167 = scmp.eq.s32.totalorder %s27, 0
      %p168 = por %p166, %p167
      %p169 = scmp.ne.s32.totalorder %s155, %s156
      %p170 = scmp.eq.s32.totalorder %s28, 1
      %p171 = por %p169, %p170
      %p173 = scmp.ne.s32.totalorder %s156, %s172
      %p174 = scmp.eq.s32.totalorder %s28, 0
      %p175 = por %p173, %p174
      %s176 = ssub.s32 %s22, %s29
      %p177 = scmp.eq.s32.totalorder %s176, 0
      %s179 = sadd.s32 %s178, 1
      %s180 = scalar_select %p177, %s178, %s179
      %p183 = pneg %p177
      %p184 = scmp.eq.s32.totalorder %s22, 1
      %p185 = por %p183, %p184
      %p186 = scmp.ne.s32.totalorder %s178, %s181
      %p187 = scmp.eq.s32.totalorder %s22, 0
      %p188 = por %p186, %p187
      %p189 = scmp.ne.s32.totalorder %s178, %s181
      %p190 = scmp.eq.s32.totalorder %s27, 1
      %p191 = por %p189, %p190
      %p192 = scmp.ne.s32.totalorder %s181, %s182
      %p193 = scmp.eq.s32.totalorder %s27, 0
      %p194 = por %p192, %p193
      %p195 = scmp.ne.s32.totalorder %s181, %s182
      %p196 = scmp.eq.s32.totalorder %s28, 1
      %p197 = por %p195, %p196
      %p199 = scmp.ne.s32.totalorder %s182, %s198
      %p200 = scmp.eq.s32.totalorder %s28, 0
      %p201 = por %p199, %p200
      %p202 = scmp.le.s32.totalorder 1, %s22
      %p203 = scmp.lt.s32.totalorder %s22, 3
      %p204 = pnand %p202, %p203
      %p205 = pneg %p204
      // Predicated region
      $region9: #{tpu_custom_call.1} parent=5 // pred_check
        _
      $region10: #{tpu_custom_call.1} parent=5 // pred_check_branch
        %207 = sbr.rel (%p204) target = $region12
      $region11: #{tpu_custom_call.1} parent=5 // pred_region
        %s208 = ssub.s32 %s22, 1
        // Predicated region
        $region13: #{tpu_custom_call.1} parent=11 // pred_check
          %p209 = pneg %p69
        $region14: #{tpu_custom_call.1} parent=11 // pred_check_branch
          %211 = sbr.rel (%p209) target = $region16
        $region15: #{tpu_custom_call.1} parent=11 // pred_region
          _
        $region16: #{tpu_custom_call.1} parent=11 // pred_fallthru
          _
        // Predicated region
        $region17: #{tpu_custom_call.1} parent=11 // pred_check
          %p212 = pneg %p90
        $region18: #{tpu_custom_call.1} parent=11 // pred_check_branch
          %214 = sbr.rel (%p212) target = $region20
        $region19: #{tpu_custom_call.1} parent=11 // pred_region
          _
        $region20: #{tpu_custom_call.1} parent=11 // pred_fallthru
          _
      $region12: #{tpu_custom_call.1} parent=5 // pred_fallthru
        _
      %p215 = scmp.lt.s32.totalorder %s22, 2
      // Predicated region
      $region21: #{tpu_custom_call.1} parent=5 // pred_check
        %p216 = pneg %p215
      $region22: #{tpu_custom_call.1} parent=5 // pred_check_branch
        %218 = sbr.rel (%p216) target = $region24
      $region23: #{tpu_custom_call.1} parent=5 // pred_region
        // Predicated region
        $region25: #{tpu_custom_call.1} parent=23 // pred_check
          %p219 = pneg %p42
        $region26: #{tpu_custom_call.1} parent=23 // pred_check_branch
          %221 = sbr.rel (%p219) target = $region28
        $region27: #{tpu_custom_call.1} parent=23 // pred_region
          %p222 = scmp.lt.s32.totalorder %s22, 1
          %s223 = scalar_select %p222, %s22, 1
          %s224 = smul.addr %s223, 8
          %s225 = scalar_lea.vmem %s0, %s224
        $region28: #{tpu_custom_call.1} parent=23 // pred_fallthru
          _
        // Predicated region
        $region29: #{tpu_custom_call.1} parent=23 // pred_check
          %p226 = pneg %p110
        $region30: #{tpu_custom_call.1} parent=23 // pred_check_branch
          %228 = sbr.rel (%p226) target = $region32
        $region31: #{tpu_custom_call.1} parent=23 // pred_region
          %s229 = sand.u32 %s100, 1
          %s230 = scalar_lea.sflag [#allocation3], %s229
          %s231 = sand.u32 %s100, 1
          %s232 = smul.addr %s231, 128
          %s233 = scalar_lea.vmem [#allocation2], %s232
          %s234 = smul.u32 8, %s22
          %236 = vsyncadd %s230, 0
          %s237 = smul.addr %s234, 2
          %s238 = smul.addr %s237, 8
          %s239 = scalar_lea.hbm %s3, %s238
          %s240 = sshll.u32 %s239, 4
          %s241 = int_to_ptr.hbm [resolvable:$true] %s240
          %s242 = sshll.u32 %s233, 4
          %s243 = int_to_ptr.vmem [resolvable:$true] %s242
          %248 = dma.hbm_to_vmem [thread:$0]  %s241, 2048, %s243, %s230, 128, 128, 8
        $region32: #{tpu_custom_call.1} parent=23 // pred_fallthru
          _
        // Predicated region
        $region33: #{tpu_custom_call.1} parent=23 // pred_check
          %p249 = pneg %p136
        $region34: #{tpu_custom_call.1} parent=23 // pred_check_branch
          %251 = sbr.rel (%p249) target = $region36
        $region35: #{tpu_custom_call.1} parent=23 // pred_region
          %p252 = scmp.lt.s32.totalorder %s22, 1
          %s253 = scalar_select %p252, %s22, 1
          %s254 = smul.addr %s253, 8
          %s255 = scalar_lea.vmem %s4, %s254
        $region36: #{tpu_custom_call.1} parent=23 // pred_fallthru
          _
      $region24: #{tpu_custom_call.1} parent=5 // pred_fallthru
        _
      %p256 = scmp.le.s32.totalorder 1, %s22
      %p257 = scmp.lt.s32.totalorder %s22, 3
      %p258 = pnand %p256, %p257
      %p259 = pneg %p258
      // Predicated region
      $region37: #{tpu_custom_call.1} parent=5 // pred_check
        _
      $region38: #{tpu_custom_call.1} parent=5 // pred_check_branch
        %261 = sbr.rel (%p258) target = $region40
      $region39: #{tpu_custom_call.1} parent=5 // pred_region
        %s262 = ssub.s32 %s22, 1
        %s263 = sand.u32 %s103, 1
        %s264 = scalar_lea.sflag [#allocation3], %s263
        %s265 = sand.u32 %s103, 1
        %s266 = smul.addr %s265, 128
        %s267 = scalar_lea.vmem [#allocation2], %s266
        // Predicated region
        $region41: #{tpu_custom_call.1} parent=39 // pred_check
          %p268 = pneg %p116
        $region42: #{tpu_custom_call.1} parent=39 // pred_check_branch
          %270 = sbr.rel (%p268) target = $region44
        $region43: #{tpu_custom_call.1} parent=39 // pred_region
          %272 = dma.done %s264, 2048
        $region44: #{tpu_custom_call.1} parent=39 // pred_fallthru
          _
        %p273 = scmp.lt.s32.totalorder %s27, 1
        %s274 = scalar_select %p273, %s27, 1
        %s275 = smul.addr %s274, 8
        %s276 = scalar_lea.vmem %s0, %s275
        %p277 = pneg %p48
        %p278 = pneg %p45
        %p279 = pneg %p69
        %p280 = pneg %p66
        %p281 = pneg %p90
        %p282 = pneg %p87
        %s283 = sand.u32 %s103, 1
        %s284 = scalar_lea.sflag [#allocation3], %s283
        %s285 = sand.u32 %s103, 1
        %s286 = smul.addr %s285, 128
        %s287 = scalar_lea.vmem [#allocation2], %s286
        %p288 = pneg %p116
        %p289 = pneg %p113
        %p290 = scmp.lt.s32.totalorder %s27, 1
        %s291 = scalar_select %p290, %s27, 1
        %s292 = smul.addr %s291, 8
        %s293 = scalar_lea.vmem %s4, %s292
        %p294 = pneg %p142
        %p295 = pneg %p139
        %p296 = pneg %p168
        %p297 = pneg %p165
        %s298 = sand.u32 %s155, 1
        %s299 = scalar_lea.sflag [#allocation4], %s298
        %s300 = sand.u32 %s155, 1
        %s301 = smul.addr %s300, 8
        %s302 = scalar_lea.vmem [#allocation5], %s301
        %p303 = pneg %p194
        %p304 = pneg %p191
        %s305 = sand.u32 %s181, 1
        %s306 = scalar_lea.sflag [#allocation7], %s305
        %s307 = sand.u32 %s181, 1
        %s308 = smul.addr %s307, 8
        %s309 = scalar_lea.vmem [#allocation6], %s308
        %p310 = scmp.lt.s32.totalorder %s27, 1
        %s311 = scalar_select %p310, %s27, 1
        %s312 = smul.addr %s311, 8
        %s313 = scalar_lea.vmem %s0, %s312
        %s314 = smul.u32 8, %s27
        %p315 = scmp.lt.s32.totalorder %s27, 1
        %s316 = scalar_select %p315, %s27, 1
        %s317 = smul.addr %s316, 8
        %s318 = scalar_lea.vmem %s4, %s317
        %v319 = vld [vmem:[%s313] sm:$0xff]
        %v320 = vld [vmem:[%s1] sm:$0xff]
        %v321 = vld [vmem:[%s1 + $0x8] sm:$0xff]
        %v322 = vld [vmem:[%s1 + $0x10] sm:$0xff]
        %v323 = vld [vmem:[%s1 + $0x18] sm:$0xff]
        %v324 = vld [vmem:[%s2] sm:$0x1]
        %v325 = vld [vmem:[%s267] sm:$0xff]
        %v326 = vld [vmem:[%s267 + $0x8] sm:$0xff]
        %v327 = vld [vmem:[%s267 + $0x10] sm:$0xff]
        %v328 = vld [vmem:[%s267 + $0x18] sm:$0xff]
        %v329 = vld [vmem:[%s267 + $0x20] sm:$0xff]
        %v330 = vld [vmem:[%s267 + $0x28] sm:$0xff]
        %v331 = vld [vmem:[%s267 + $0x30] sm:$0xff]
        %v332 = vld [vmem:[%s267 + $0x38] sm:$0xff]
        %v333 = vld [vmem:[%s267 + $0x40] sm:$0xff]
        %v334 = vld [vmem:[%s267 + $0x48] sm:$0xff]
        %v335 = vld [vmem:[%s267 + $0x50] sm:$0xff]
        %v336 = vld [vmem:[%s267 + $0x58] sm:$0xff]
        %v337 = vld [vmem:[%s267 + $0x60] sm:$0xff]
        %v338 = vld [vmem:[%s267 + $0x68] sm:$0xff]
        %v339 = vld [vmem:[%s267 + $0x70] sm:$0xff]
        %v340 = vld [vmem:[%s267 + $0x78] sm:$0xff]
        %v341 = vld [vmem:[%s318] sm:$0xff]
        %v343 = vperm.slane %v324, 0
        %vm345 = vcmask 261120
        %v347 = vsel %vm345, %v319, 0
        %349 = vmatpush.msra.mxu0 0.0
        %350 = vmatpush.msra.mxu0 0.0
        %351 = vmatpush.msra.mxu0 0.0
        %352 = vmatpush.msra.mxu0 0.0
        %353 = vmatpush.msra.mxu0 0.0
        %354 = vmatpush.msra.mxu0 0.0
        %355 = vmatpush.msra.mxu0 0.0
        %356 = vmatpush.msra.mxu0 0.0
        %357 = vmatpush.msra.mxu0 0.0
        %358 = vmatpush.msra.mxu0 0.0
        %359 = vmatpush.msra.mxu0 0.0
        %360 = vmatpush.msra.mxu0 0.0
        %361 = vmatpush.msra.mxu0 %v323
        %362 = vmatpush.msra.mxu0 %v322
        %363 = vmatpush.msra.mxu0 %v321
        %364 = vmatpush.msra.mxu0 %v320
        %365 = vmatmul.f32.gmra.mxu0 %v347
        %v366 = vpop.f32.mrf.mxu0
        %v367 = vadd.f32 %v343, %v366
        %368 = vdwg.mxu0
        %v369 = vsub.f32 0.0, %v367
        %v370 = vmul.f32 %v369, 1.442695
        %v371 = vpow.pop %v370
        %v372 = vadd.f32 %v371, 1.0
        %v373 = vrcp.pop %v372
        %vm374 = vcmask 162952
        %v375 = vsel %vm374, %v367, -inf
        %376 = vmax.xlane.f32.xlu0 %v375
        %v377 = vpop.xlane.xlu0 %376
        %v378 = vsub.f32 %v367, %v377
        %v379 = vmul.f32 %v378, 1.442695
        %v380 = vpow.pop %v379
        %382 = vrot.lane.b32.xlu0 %v380, 111
        %v383 = vpop.permute.xlu0 %382
        %vm385 = vcmask 23552
        %v386 = vsel %vm385, %v383, 0.0
        %387 = vadd.xlane.f32.xlu0 %v386
        %v388 = vpop.xlane.xlu0 %387
        %v389 = vrcp.pop %v388
        %v390 = vmul.f32 %v380, %v389
        %v392 = vrot.slane %v367, 1
        %v393 = vrot.slane %v367, 2
        %v394 = vrot.slane %v367, 3
        %v395 = vrot.slane %v367, 4
        %v396 = vrot.slane %v367, 5
        %v397 = vrot.slane %v367, 6
        %v398 = vrot.slane %v367, 7
        %v399 = vperm.slane %v367, 0
        %v400 = vperm.slane %v392, 0
        %v401 = vperm.slane %v393, 0
        %v402 = vperm.slane %v394, 0
        %v403 = vperm.slane %v395, 0
        %v404 = vperm.slane %v396, 0
        %v405 = vperm.slane %v397, 0
        %v406 = vperm.slane %v398, 0
        %v415 = vmul.f32 %v325, %v399
        %v416 = vmul.f32 %v326, %v399
        %v417 = vmul.f32 %v327, %v400
        %v418 = vmul.f32 %v328, %v400
        %v419 = vmul.f32 %v329, %v401
        %v420 = vmul.f32 %v330, %v401
        %v421 = vmul.f32 %v331, %v402
        %v422 = vmul.f32 %v332, %v402
        %v423 = vmul.f32 %v333, %v403
        %v424 = vmul.f32 %v334, %v403
        %v425 = vmul.f32 %v335, %v404
        %v426 = vmul.f32 %v336, %v404
        %v427 = vmul.f32 %v337, %v405
        %v428 = vmul.f32 %v338, %v405
        %v429 = vmul.f32 %v339, %v406
        %v430 = vmul.f32 %v340, %v406
        %vm431 = vcmask 130048
        %v432 = vsel %vm431, %v415, 0.0
        %433 = vadd.xlane.f32.xlu0 %v432
        %v434 = vpop.xlane.xlu0 %433
        %v435 = vsel %vm431, %v416, 0.0
        %436 = vadd.xlane.f32.xlu0 %v435
        %v437 = vpop.xlane.xlu0 %436
        %v438 = vsel %vm431, %v417, 0.0
        %439 = vadd.xlane.f32.xlu0 %v438
        %v440 = vpop.xlane.xlu0 %439
        %v441 = vsel %vm431, %v418, 0.0
        %442 = vadd.xlane.f32.xlu0 %v441
        %v443 = vpop.xlane.xlu0 %442
        %v444 = vsel %vm431, %v419, 0.0
        %445 = vadd.xlane.f32.xlu0 %v444
        %v446 = vpop.xlane.xlu0 %445
        %v447 = vsel %vm431, %v420, 0.0
        %448 = vadd.xlane.f32.xlu0 %v447
        %v449 = vpop.xlane.xlu0 %448
        %v450 = vsel %vm431, %v421, 0.0
        %451 = vadd.xlane.f32.xlu0 %v450
        %v452 = vpop.xlane.xlu0 %451
        %v453 = vsel %vm431, %v422, 0.0
        %454 = vadd.xlane.f32.xlu0 %v453
        %v455 = vpop.xlane.xlu0 %454
        %v456 = vsel %vm431, %v423, 0.0
        %457 = vadd.xlane.f32.xlu0 %v456
        %v458 = vpop.xlane.xlu0 %457
        %v459 = vsel %vm431, %v424, 0.0
        %460 = vadd.xlane.f32.xlu0 %v459
        %v461 = vpop.xlane.xlu0 %460
        %v462 = vsel %vm431, %v425, 0.0
        %463 = vadd.xlane.f32.xlu0 %v462
        %v464 = vpop.xlane.xlu0 %463
        %v465 = vsel %vm431, %v426, 0.0
        %466 = vadd.xlane.f32.xlu0 %v465
        %v467 = vpop.xlane.xlu0 %466
        %v468 = vsel %vm431, %v427, 0.0
        %469 = vadd.xlane.f32.xlu0 %v468
        %v470 = vpop.xlane.xlu0 %469
        %v471 = vsel %vm431, %v428, 0.0
        %472 = vadd.xlane.f32.xlu0 %v471
        %v473 = vpop.xlane.xlu0 %472
        %v474 = vsel %vm431, %v429, 0.0
        %475 = vadd.xlane.f32.xlu0 %v474
        %v476 = vpop.xlane.xlu0 %475
        %v477 = vsel %vm431, %v430, 0.0
        %478 = vadd.xlane.f32.xlu0 %v477
        %v479 = vpop.xlane.xlu0 %478
        %v480 = vmul.f32 %v434, 0.25
        %v481 = vmul.f32 %v437, 0.25
        %v482 = vmul.f32 %v440, 0.25
        %v483 = vmul.f32 %v443, 0.25
        %v484 = vmul.f32 %v446, 0.25
        %v485 = vmul.f32 %v449, 0.25
        %v486 = vmul.f32 %v452, 0.25
        %v487 = vmul.f32 %v455, 0.25
        %v488 = vmul.f32 %v458, 0.25
        %v489 = vmul.f32 %v461, 0.25
        %v490 = vmul.f32 %v464, 0.25
        %v491 = vmul.f32 %v467, 0.25
        %v492 = vmul.f32 %v470, 0.25
        %v493 = vmul.f32 %v473, 0.25
        %v494 = vmul.f32 %v476, 0.25
        %v495 = vmul.f32 %v479, 0.25
        %v512 = vlaneseq
        %v513 = vand.u32 %v512, 127
        %v514 = vperm.slane %v480, %v513
        %v515 = vadd.s32 %v513, 4294967288
        %v516 = vperm.slane %v481, %v515
        %vm517 = vcmask 130112
        %v518 = vsel %vm517, %v516, %v514
        %v519 = vperm.slane %v482, %v513
        %v520 = vperm.slane %v483, %v515
        %v521 = vsel %vm517, %v520, %v519
        %v522 = vperm.slane %v484, %v513
        %v523 = vperm.slane %v485, %v515
        %v524 = vsel %vm517, %v523, %v522
        %v525 = vperm.slane %v486, %v513
        %v526 = vperm.slane %v487, %v515
        %v527 = vsel %vm517, %v526, %v525
        %v528 = vperm.slane %v488, %v513
        %v529 = vperm.slane %v489, %v515
        %v530 = vsel %vm517, %v529, %v528
        %v531 = vperm.slane %v490, %v513
        %v532 = vperm.slane %v491, %v515
        %v533 = vsel %vm517, %v532, %v531
        %v534 = vperm.slane %v492, %v513
        %v535 = vperm.slane %v493, %v515
        %v536 = vsel %vm517, %v535, %v534
        %v537 = vperm.slane %v494, %v513
        %v538 = vperm.slane %v495, %v515
        %v539 = vsel %vm517, %v538, %v537
        %vm540 = vcmask 1041409
        %v541 = vsel %vm540, %v521, %v518
        %vm542 = vcmask 1042434
        %v543 = vsel %vm542, %v524, %v541
        %vm544 = vcmask 1043459
        %v545 = vsel %vm544, %v527, %v543
        %vm546 = vcmask 1044484
        %v547 = vsel %vm546, %v530, %v545
        %vm548 = vcmask 1045509
        %v549 = vsel %vm548, %v533, %v547
        %vm550 = vcmask 1046534
        %v551 = vsel %vm550, %v536, %v549
        %vm552 = vcmask 1047559
        %v553 = vsel %vm552, %v539, %v551
        %v555 = vsel %vm431, %v553, -inf
        %556 = vmax.xlane.f32.xlu0 %v555
        %v557 = vpop.xlane.xlu0 %556
        %v559 = vperm.slane %v557, 0
        %v560 = vperm.slane %v557, 1
        %v561 = vperm.slane %v557, 2
        %v562 = vperm.slane %v557, 3
        %v563 = vperm.slane %v557, 4
        %v564 = vperm.slane %v557, 5
        %v565 = vperm.slane %v557, 6
        %v566 = vperm.slane %v557, 7
        %v575 = vsub.f32 %v480, %v559
        %v576 = vsub.f32 %v481, %v559
        %v577 = vsub.f32 %v482, %v560
        %v578 = vsub.f32 %v483, %v560
        %v579 = vsub.f32 %v484, %v561
        %v580 = vsub.f32 %v485, %v561
        %v581 = vsub.f32 %v486, %v562
        %v582 = vsub.f32 %v487, %v562
        %v583 = vsub.f32 %v488, %v563
        %v584 = vsub.f32 %v489, %v563
        %v585 = vsub.f32 %v490, %v564
        %v586 = vsub.f32 %v491, %v564
        %v587 = vsub.f32 %v492, %v565
        %v588 = vsub.f32 %v493, %v565
        %v589 = vsub.f32 %v494, %v566
        %v590 = vsub.f32 %v495, %v566
        %v591 = vmul.f32 %v575, 1.442695
        %v592 = vpow.pop %v591
        %v593 = vmul.f32 %v576, 1.442695
        %v594 = vpow.pop %v593
        %v595 = vmul.f32 %v577, 1.442695
        %v596 = vpow.pop %v595
        %v597 = vmul.f32 %v578, 1.442695
        %v598 = vpow.pop %v597
        %v599 = vmul.f32 %v579, 1.442695
        %v600 = vpow.pop %v599
        %v601 = vmul.f32 %v580, 1.442695
        %v602 = vpow.pop %v601
        %v603 = vmul.f32 %v581, 1.442695
        %v604 = vpow.pop %v603
        %v605 = vmul.f32 %v582, 1.442695
        %v606 = vpow.pop %v605
        %v607 = vmul.f32 %v583, 1.442695
        %v608 = vpow.pop %v607
        %v609 = vmul.f32 %v584, 1.442695
        %v610 = vpow.pop %v609
        %v611 = vmul.f32 %v585, 1.442695
        %v612 = vpow.pop %v611
        %v613 = vmul.f32 %v586, 1.442695
        %v614 = vpow.pop %v613
        %v615 = vmul.f32 %v587, 1.442695
        %v616 = vpow.pop %v615
        %v617 = vmul.f32 %v588, 1.442695
        %v618 = vpow.pop %v617
        %v619 = vmul.f32 %v589, 1.442695
        %v620 = vpow.pop %v619
        %v621 = vmul.f32 %v590, 1.442695
        %v622 = vpow.pop %v621
        %639 = vset.pattern.permute.xlu0 0
        %640 = vperm.xlu0 %639, %v592
        %v641 = vpop.permute.xlu0 %640
        %642 = vset.pattern.permute.xlu0 0
        %643 = vperm.xlu0 %642, %v594
        %v644 = vpop.permute.xlu0 %643
        %645 = vset.pattern.permute.xlu0 0
        %646 = vperm.xlu0 %645, %v596
        %v647 = vpop.permute.xlu0 %646
        %648 = vset.pattern.permute.xlu0 0
        %649 = vperm.xlu0 %648, %v598
        %v650 = vpop.permute.xlu0 %649
        %651 = vset.pattern.permute.xlu0 0
        %652 = vperm.xlu0 %651, %v600
        %v653 = vpop.permute.xlu0 %652
        %654 = vset.pattern.permute.xlu0 0
        %655 = vperm.xlu0 %654, %v602
        %v656 = vpop.permute.xlu0 %655
        %657 = vset.pattern.permute.xlu0 0
        %658 = vperm.xlu0 %657, %v604
        %v659 = vpop.permute.xlu0 %658
        %660 = vset.pattern.permute.xlu0 0
        %661 = vperm.xlu0 %660, %v606
        %v662 = vpop.permute.xlu0 %661
        %663 = vset.pattern.permute.xlu0 0
        %664 = vperm.xlu0 %663, %v608
        %v665 = vpop.permute.xlu0 %664
        %666 = vset.pattern.permute.xlu0 0
        %667 = vperm.xlu0 %666, %v610
        %v668 = vpop.permute.xlu0 %667
        %669 = vset.pattern.permute.xlu0 0
        %670 = vperm.xlu0 %669, %v612
        %v671 = vpop.permute.xlu0 %670
        %672 = vset.pattern.permute.xlu0 0
        %673 = vperm.xlu0 %672, %v614
        %v674 = vpop.permute.xlu0 %673
        %675 = vset.pattern.permute.xlu0 0
        %676 = vperm.xlu0 %675, %v616
        %v677 = vpop.permute.xlu0 %676
        %678 = vset.pattern.permute.xlu0 0
        %679 = vperm.xlu0 %678, %v618
        %v680 = vpop.permute.xlu0 %679
        %681 = vset.pattern.permute.xlu0 0
        %682 = vperm.xlu0 %681, %v620
        %v683 = vpop.permute.xlu0 %682
        %684 = vset.pattern.permute.xlu0 0
        %685 = vperm.xlu0 %684, %v622
        %v686 = vpop.permute.xlu0 %685
        %v687 = vperm.slane %v641, %v513
        %v688 = vperm.slane %v644, %v515
        %v689 = vsel %vm517, %v688, %v687
        %v690 = vperm.slane %v647, %v513
        %v691 = vperm.slane %v650, %v515
        %v692 = vsel %vm517, %v691, %v690
        %v693 = vperm.slane %v653, %v513
        %v694 = vperm.slane %v656, %v515
        %v695 = vsel %vm517, %v694, %v693
        %v696 = vperm.slane %v659, %v513
        %v697 = vperm.slane %v662, %v515
        %v698 = vsel %vm517, %v697, %v696
        %v699 = vperm.slane %v665, %v513
        %v700 = vperm.slane %v668, %v515
        %v701 = vsel %vm517, %v700, %v699
        %v702 = vperm.slane %v671, %v513
        %v703 = vperm.slane %v674, %v515
        %v704 = vsel %vm517, %v703, %v702
        %v705 = vperm.slane %v677, %v513
        %v706 = vperm.slane %v680, %v515
        %v707 = vsel %vm517, %v706, %v705
        %v708 = vperm.slane %v683, %v513
        %v709 = vperm.slane %v686, %v515
        %v710 = vsel %vm517, %v709, %v708
        %v711 = vsel %vm540, %v692, %v689
        %v712 = vsel %vm542, %v695, %v711
        %v713 = vsel %vm544, %v698, %v712
        %v714 = vsel %vm546, %v701, %v713
        %v715 = vsel %vm548, %v704, %v714
        %v716 = vsel %vm550, %v707, %v715
        %v717 = vsel %vm552, %v710, %v716
        %v719 = vsel %vm431, %v717, 0.0
        %720 = vadd.xlane.f32.xlu0 %v719
        %v721 = vpop.xlane.xlu0 %720
        %v722 = vrcp.pop %v721
        %v724 = vperm.slane %v722, 0
        %v725 = vperm.slane %v722, 1
        %v726 = vperm.slane %v722, 2
        %v727 = vperm.slane %v722, 3
        %v728 = vperm.slane %v722, 4
        %v729 = vperm.slane %v722, 5
        %v730 = vperm.slane %v722, 6
        %v731 = vperm.slane %v722, 7
        %v740 = vmul.f32 %v592, %v724
        %v741 = vmul.f32 %v594, %v724
        %v742 = vmul.f32 %v596, %v725
        %v743 = vmul.f32 %v598, %v725
        %v744 = vmul.f32 %v600, %v726
        %v745 = vmul.f32 %v602, %v726
        %v746 = vmul.f32 %v604, %v727
        %v747 = vmul.f32 %v606, %v727
        %v748 = vmul.f32 %v608, %v728
        %v749 = vmul.f32 %v610, %v728
        %v750 = vmul.f32 %v612, %v729
        %v751 = vmul.f32 %v614, %v729
        %v752 = vmul.f32 %v616, %v730
        %v753 = vmul.f32 %v618, %v730
        %v754 = vmul.f32 %v620, %v731
        %v755 = vmul.f32 %v622, %v731
        %757 = vset.pattern.permute.xlu0 16
        %758 = vperm.xlu0 %757, %v373
        %v759 = vpop.permute.xlu0 %758
        %777 = vset.pattern.permute.xlu0 0
        %778 = vperm.xlu0 %777, %v740
        %v779 = vpop.permute.xlu0 %778
        %780 = vset.pattern.permute.xlu0 0
        %781 = vperm.xlu0 %780, %v741
        %v782 = vpop.permute.xlu0 %781
        %783 = vset.pattern.permute.xlu0 0
        %784 = vperm.xlu0 %783, %v742
        %v785 = vpop.permute.xlu0 %784
        %786 = vset.pattern.permute.xlu0 0
        %787 = vperm.xlu0 %786, %v743
        %v788 = vpop.permute.xlu0 %787
        %789 = vset.pattern.permute.xlu0 0
        %790 = vperm.xlu0 %789, %v744
        %v791 = vpop.permute.xlu0 %790
        %792 = vset.pattern.permute.xlu0 0
        %793 = vperm.xlu0 %792, %v745
        %v794 = vpop.permute.xlu0 %793
        %795 = vset.pattern.permute.xlu0 0
        %796 = vperm.xlu0 %795, %v746
        %v797 = vpop.permute.xlu0 %796
        %798 = vset.pattern.permute.xlu0 0
        %799 = vperm.xlu0 %798, %v747
        %v800 = vpop.permute.xlu0 %799
        %801 = vset.pattern.permute.xlu0 0
        %802 = vperm.xlu0 %801, %v748
        %v803 = vpop.permute.xlu0 %802
        %804 = vset.pattern.permute.xlu0 0
        %805 = vperm.xlu0 %804, %v749
        %v806 = vpop.permute.xlu0 %805
        %807 = vset.pattern.permute.xlu0 0
        %808 = vperm.xlu0 %807, %v750
        %v809 = vpop.permute.xlu0 %808
        %810 = vset.pattern.permute.xlu0 0
        %811 = vperm.xlu0 %810, %v751
        %v812 = vpop.permute.xlu0 %811
        %813 = vset.pattern.permute.xlu0 0
        %814 = vperm.xlu0 %813, %v752
        %v815 = vpop.permute.xlu0 %814
        %816 = vset.pattern.permute.xlu0 0
        %817 = vperm.xlu0 %816, %v753
        %v818 = vpop.permute.xlu0 %817
        %819 = vset.pattern.permute.xlu0 0
        %820 = vperm.xlu0 %819, %v754
        %v821 = vpop.permute.xlu0 %820
        %822 = vset.pattern.permute.xlu0 0
        %823 = vperm.xlu0 %822, %v755
        %v824 = vpop.permute.xlu0 %823
        %v825 = vperm.slane %v779, %v513
        %v826 = vperm.slane %v782, %v515
        %v827 = vsel %vm517, %v826, %v825
        %v828 = vperm.slane %v785, %v513
        %v829 = vperm.slane %v788, %v515
        %v830 = vsel %vm517, %v829, %v828
        %v831 = vperm.slane %v791, %v513
        %v832 = vperm.slane %v794, %v515
        %v833 = vsel %vm517, %v832, %v831
        %v834 = vperm.slane %v797, %v513
        %v835 = vperm.slane %v800, %v515
        %v836 = vsel %vm517, %v835, %v834
        %v837 = vperm.slane %v803, %v513
        %v838 = vperm.slane %v806, %v515
        %v839 = vsel %vm517, %v838, %v837
        %v840 = vperm.slane %v809, %v513
        %v841 = vperm.slane %v812, %v515
        %v842 = vsel %vm517, %v841, %v840
        %v843 = vperm.slane %v815, %v513
        %v844 = vperm.slane %v818, %v515
        %v845 = vsel %vm517, %v844, %v843
        %v846 = vperm.slane %v821, %v513
        %v847 = vperm.slane %v824, %v515
        %v848 = vsel %vm517, %v847, %v846
        %v849 = vsel %vm540, %v830, %v827
        %v850 = vsel %vm542, %v833, %v849
        %v851 = vsel %vm544, %v836, %v850
        %v852 = vsel %vm546, %v839, %v851
        %v853 = vsel %vm548, %v842, %v852
        %v854 = vsel %vm550, %v845, %v853
        %v855 = vsel %vm552, %v848, %v854
        %v857 = vmul.f32 %v759, %v855
        %v858 = vsub.f32 1.0, %v373
        %860 = vset.pattern.permute.xlu0 16
        %861 = vperm.xlu0 %860, %v858
        %v862 = vpop.permute.xlu0 %861
        %v864 = vmul.f32 %v862, %v341
        %v865 = vadd.f32 %v857, %v864
        %v866 = vlaneseq
        %v867 = vshrl.u32 %v866, 7
        %v868 = vadd.s32 %v867, 8
        %v869 = vadd.s32 %v513, 4294967295
        %vm870 = vcmp.lt.s32.totalorder %v869, 0
        %v871 = vsub.s32 0, %v869
        %v872 = vsel %vm870, %v871, %v869
        %v873 = vshrl.u32 %v872, 4
        %v874 = vand.u32 %v872, 15
        %v875 = vsub.s32 0, %v874
        %v876 = vsel %vm870, %v875, %v874
        %vm877 = vcmp.ne.s32.totalorder %v876, 0
        %vm878 = vcmp.lt.s32.totalorder %v876, 0
        %vm879 = vmand %vm878, %vm877
        %v880 = vadd.s32 %v876, 16
        %v881 = vsel %vm879, %v880, %v876
        %vm882 = vcmp.eq.s32.totalorder %v867, %v881
        %vm883 = vcmp.eq.s32.totalorder %v868, %v881
        %v884 = vsel %vm882, 1, 0
        %v885 = vsel %vm883, 1, 0
        %v886 = vcvt.s32.f32 %v884
        %v887 = vcvt.s32.f32 %v885
        %v889 = vsel %vm431, %v865, 0
        %891 = vmatpush.msra.mxu0 0.0
        %892 = vmatpush.msra.mxu0 0.0
        %893 = vmatpush.msra.mxu0 0.0
        %894 = vmatpush.msra.mxu0 0.0
        %895 = vmatpush.msra.mxu0 0.0
        %896 = vmatpush.msra.mxu0 0.0
        %897 = vmatpush.msra.mxu0 0.0
        %898 = vmatpush.msra.mxu0 0.0
        %899 = vmatpush.msra.mxu0 0.0
        %900 = vmatpush.msra.mxu0 0.0
        %901 = vmatpush.msra.mxu0 0.0
        %902 = vmatpush.msra.mxu0 0.0
        %903 = vmatpush.msra.mxu0 0.0
        %904 = vmatpush.msra.mxu0 0.0
        %905 = vmatpush.msra.mxu0 %v887
        %906 = vmatpush.msra.mxu0 %v886
        %907 = vmatmul.f32.gmra.mxu0 %v889
        %v908 = vpop.f32.mrf.mxu0
        %v909 = vadd.f32 0.0, %v908
        %910 = vdwg.mxu0
        %912 = vset.pattern.permute.xlu0 17
        %913 = vperm.xlu0 %912, %v390
        %v914 = vpop.permute.xlu0 %913
        %v916 = vmul.f32 %v914, %v909
        %917 = vset.pattern.permute.xlu0 18
        %918 = vperm.xlu0 %917, %v390
        %v919 = vpop.permute.xlu0 %918
        %v921 = vmul.f32 %v919, %v865
        %v922 = vadd.f32 %v916, %v921
        %v923 = vadd.s32 %v513, 1
        %vm924 = vcmp.lt.s32.totalorder %v923, 0
        %v925 = vsub.s32 0, %v923
        %v926 = vsel %vm924, %v925, %v923
        %v927 = vshrl.u32 %v926, 4
        %v928 = vand.u32 %v926, 15
        %v929 = vsub.s32 0, %v928
        %v930 = vsel %vm924, %v929, %v928
        %vm931 = vcmp.ne.s32.totalorder %v930, 0
        %vm932 = vcmp.lt.s32.totalorder %v930, 0
        %vm933 = vmand %vm932, %vm931
        %v934 = vadd.s32 %v930, 16
        %v935 = vsel %vm933, %v934, %v930
        %vm936 = vcmp.eq.s32.totalorder %v867, %v935
        %vm937 = vcmp.eq.s32.totalorder %v868, %v935
        %v938 = vsel %vm936, 1, 0
        %v939 = vsel %vm937, 1, 0
        %v940 = vcvt.s32.f32 %v938
        %v941 = vcvt.s32.f32 %v939
        %942 = vmatpush.msra.mxu0 0.0
        %943 = vmatpush.msra.mxu0 0.0
        %944 = vmatpush.msra.mxu0 0.0
        %945 = vmatpush.msra.mxu0 0.0
        %946 = vmatpush.msra.mxu0 0.0
        %947 = vmatpush.msra.mxu0 0.0
        %948 = vmatpush.msra.mxu0 0.0
        %949 = vmatpush.msra.mxu0 0.0
        %950 = vmatpush.msra.mxu0 0.0
        %951 = vmatpush.msra.mxu0 0.0
        %952 = vmatpush.msra.mxu0 0.0
        %953 = vmatpush.msra.mxu0 0.0
        %954 = vmatpush.msra.mxu0 0.0
        %955 = vmatpush.msra.mxu0 0.0
        %956 = vmatpush.msra.mxu0 %v941
        %957 = vmatpush.msra.mxu0 %v940
        %958 = vmatmul.f32.gmra.mxu0 %v889
        %v959 = vpop.f32.mrf.mxu0
        %v960 = vadd.f32 0.0, %v959
        %961 = vdwg.mxu0
        %962 = vset.pattern.permute.xlu0 19
        %963 = vperm.xlu0 %962, %v390
        %v964 = vpop.permute.xlu0 %963
        %v966 = vmul.f32 %v964, %v960
        %v967 = vadd.f32 %v922, %v966
        %968 = vst.msk [vmem:[%s309] sm:$0xff] %vm431, %v967
        %v969 = vperm.slane %v967, 0
        %v970 = vlaneseq
        %v971 = vshrl.u32 %v970, 7
        %973 = vset.pattern.permute.xlu0 %v971
        %974 = vperm.xlu0 %973, %v969
        %v975 = vpop.permute.xlu0 %974
        %v976 = vlaneseq
        %v977 = vshrl.u32 %v976, 7
        %v978 = vadd.s32 %v977, 8
        %979 = vset.pattern.permute.xlu0 %v978
        %980 = vperm.xlu0 %979, %v969
        %v981 = vpop.permute.xlu0 %980
        %v982 = vperm.slane %v967, 1
        %v983 = vlaneseq
        %v984 = vshrl.u32 %v983, 7
        %986 = vset.pattern.permute.xlu0 %v984
        %987 = vperm.xlu0 %986, %v982
        %v988 = vpop.permute.xlu0 %987
        %v989 = vlaneseq
        %v990 = vshrl.u32 %v989, 7
        %v991 = vadd.s32 %v990, 8
        %992 = vset.pattern.permute.xlu0 %v991
        %993 = vperm.xlu0 %992, %v982
        %v994 = vpop.permute.xlu0 %993
        %v995 = vperm.slane %v967, 2
        %v996 = vlaneseq
        %v997 = vshrl.u32 %v996, 7
        %999 = vset.pattern.permute.xlu0 %v997
        %1000 = vperm.xlu0 %999, %v995
        %v1001 = vpop.permute.xlu0 %1000
        %v1002 = vlaneseq
        %v1003 = vshrl.u32 %v1002, 7
        %v1004 = vadd.s32 %v1003, 8
        %1005 = vset.pattern.permute.xlu0 %v1004
        %1006 = vperm.xlu0 %1005, %v995
        %v1007 = vpop.permute.xlu0 %1006
        %v1008 = vperm.slane %v967, 3
        %v1009 = vlaneseq
        %v1010 = vshrl.u32 %v1009, 7
        %1012 = vset.pattern.permute.xlu0 %v1010
        %1013 = vperm.xlu0 %1012, %v1008
        %v1014 = vpop.permute.xlu0 %1013
        %v1015 = vlaneseq
        %v1016 = vshrl.u32 %v1015, 7
        %v1017 = vadd.s32 %v1016, 8
        %1018 = vset.pattern.permute.xlu0 %v1017
        %1019 = vperm.xlu0 %1018, %v1008
        %v1020 = vpop.permute.xlu0 %1019
        %v1021 = vperm.slane %v967, 4
        %v1022 = vlaneseq
        %v1023 = vshrl.u32 %v1022, 7
        %1025 = vset.pattern.permute.xlu0 %v1023
        %1026 = vperm.xlu0 %1025, %v1021
        %v1027 = vpop.permute.xlu0 %1026
        %v1028 = vlaneseq
        %v1029 = vshrl.u32 %v1028, 7
        %v1030 = vadd.s32 %v1029, 8
        %1031 = vset.pattern.permute.xlu0 %v1030
        %1032 = vperm.xlu0 %1031, %v1021
        %v1033 = vpop.permute.xlu0 %1032
        %v1034 = vperm.slane %v967, 5
        %v1035 = vlaneseq
        %v1036 = vshrl.u32 %v1035, 7
        %1038 = vset.pattern.permute.xlu0 %v1036
        %1039 = vperm.xlu0 %1038, %v1034
        %v1040 = vpop.permute.xlu0 %1039
        %v1041 = vlaneseq
        %v1042 = vshrl.u32 %v1041, 7
        %v1043 = vadd.s32 %v1042, 8
        %1044 = vset.pattern.permute.xlu0 %v1043
        %1045 = vperm.xlu0 %1044, %v1034
        %v1046 = vpop.permute.xlu0 %1045
        %v1047 = vperm.slane %v967, 6
        %v1048 = vlaneseq
        %v1049 = vshrl.u32 %v1048, 7
        %1051 = vset.pattern.permute.xlu0 %v1049
        %1052 = vperm.xlu0 %1051, %v1047
        %v1053 = vpop.permute.xlu0 %1052
        %v1054 = vlaneseq
        %v1055 = vshrl.u32 %v1054, 7
        %v1056 = vadd.s32 %v1055, 8
        %1057 = vset.pattern.permute.xlu0 %v1056
        %1058 = vperm.xlu0 %1057, %v1047
        %v1059 = vpop.permute.xlu0 %1058
        %v1060 = vperm.slane %v967, 7
        %v1061 = vlaneseq
        %v1062 = vshrl.u32 %v1061, 7
        %1064 = vset.pattern.permute.xlu0 %v1062
        %1065 = vperm.xlu0 %1064, %v1060
        %v1066 = vpop.permute.xlu0 %1065
        %v1067 = vlaneseq
        %v1068 = vshrl.u32 %v1067, 7
        %v1069 = vadd.s32 %v1068, 8
        %1070 = vset.pattern.permute.xlu0 %v1069
        %1071 = vperm.xlu0 %1070, %v1060
        %v1072 = vpop.permute.xlu0 %1071
        %v1073 = vmul.f32 %v975, %v325
        %v1074 = vmul.f32 %v981, %v326
        %v1075 = vmul.f32 %v988, %v327
        %v1076 = vmul.f32 %v994, %v328
        %v1077 = vmul.f32 %v1001, %v329
        %v1078 = vmul.f32 %v1007, %v330
        %v1079 = vmul.f32 %v1014, %v331
        %v1080 = vmul.f32 %v1020, %v332
        %v1081 = vmul.f32 %v1027, %v333
        %v1082 = vmul.f32 %v1033, %v334
        %v1083 = vmul.f32 %v1040, %v335
        %v1084 = vmul.f32 %v1046, %v336
        %v1085 = vmul.f32 %v1053, %v337
        %v1086 = vmul.f32 %v1059, %v338
        %v1087 = vmul.f32 %v1066, %v339
        %v1088 = vmul.f32 %v1072, %v340
        %v1089 = vsel %vm431, %v1073, 0.0
        %v1090 = vsel %vm431, %v1074, 0.0
        %v1091 = vadd.f32 %v1089, %v1090
        %v1092 = vrot.slane %v1091, 4
        %v1093 = vadd.f32 %v1091, %v1092
        %v1094 = vrot.slane %v1093, 2
        %v1095 = vadd.f32 %v1093, %v1094
        %v1096 = vrot.slane %v1095, 1
        %v1097 = vadd.f32 %v1095, %v1096
        %v1098 = vsel %vm431, %v1075, 0.0
        %v1099 = vsel %vm431, %v1076, 0.0
        %v1100 = vadd.f32 %v1098, %v1099
        %v1101 = vrot.slane %v1100, 4
        %v1102 = vadd.f32 %v1100, %v1101
        %v1103 = vrot.slane %v1102, 2
        %v1104 = vadd.f32 %v1102, %v1103
        %v1105 = vrot.slane %v1104, 1
        %v1106 = vadd.f32 %v1104, %v1105
        %v1107 = vsel %vm431, %v1077, 0.0
        %v1108 = vsel %vm431, %v1078, 0.0
        %v1109 = vadd.f32 %v1107, %v1108
        %v1110 = vrot.slane %v1109, 4
        %v1111 = vadd.f32 %v1109, %v1110
        %v1112 = vrot.slane %v1111, 2
        %v1113 = vadd.f32 %v1111, %v1112
        %v1114 = vrot.slane %v1113, 1
        %v1115 = vadd.f32 %v1113, %v1114
        %v1116 = vsel %vm431, %v1079, 0.0
        %v1117 = vsel %vm431, %v1080, 0.0
        %v1118 = vadd.f32 %v1116, %v1117
        %v1119 = vrot.slane %v1118, 4
        %v1120 = vadd.f32 %v1118, %v1119
        %v1121 = vrot.slane %v1120, 2
        %v1122 = vadd.f32 %v1120, %v1121
        %v1123 = vrot.slane %v1122, 1
        %v1124 = vadd.f32 %v1122, %v1123
        %v1125 = vsel %vm431, %v1081, 0.0
        %v1126 = vsel %vm431, %v1082, 0.0
        %v1127 = vadd.f32 %v1125, %v1126
        %v1128 = vrot.slane %v1127, 4
        %v1129 = vadd.f32 %v1127, %v1128
        %v1130 = vrot.slane %v1129, 2
        %v1131 = vadd.f32 %v1129, %v1130
        %v1132 = vrot.slane %v1131, 1
        %v1133 = vadd.f32 %v1131, %v1132
        %v1134 = vsel %vm431, %v1083, 0.0
        %v1135 = vsel %vm431, %v1084, 0.0
        %v1136 = vadd.f32 %v1134, %v1135
        %v1137 = vrot.slane %v1136, 4
        %v1138 = vadd.f32 %v1136, %v1137
        %v1139 = vrot.slane %v1138, 2
        %v1140 = vadd.f32 %v1138, %v1139
        %v1141 = vrot.slane %v1140, 1
        %v1142 = vadd.f32 %v1140, %v1141
        %v1143 = vsel %vm431, %v1085, 0.0
        %v1144 = vsel %vm431, %v1086, 0.0
        %v1145 = vadd.f32 %v1143, %v1144
        %v1146 = vrot.slane %v1145, 4
        %v1147 = vadd.f32 %v1145, %v1146
        %v1148 = vrot.slane %v1147, 2
        %v1149 = vadd.f32 %v1147, %v1148
        %v1150 = vrot.slane %v1149, 1
        %v1151 = vadd.f32 %v1149, %v1150
        %v1152 = vsel %vm431, %v1087, 0.0
        %v1153 = vsel %vm431, %v1088, 0.0
        %v1154 = vadd.f32 %v1152, %v1153
        %v1155 = vrot.slane %v1154, 4
        %v1156 = vadd.f32 %v1154, %v1155
        %v1157 = vrot.slane %v1156, 2
        %v1158 = vadd.f32 %v1156, %v1157
        %v1159 = vrot.slane %v1158, 1
        %v1160 = vadd.f32 %v1158, %v1159
        %v1169 = vsel %vm540, %v1106, %v1097
        %v1170 = vsel %vm542, %v1115, %v1169
        %v1171 = vsel %vm544, %v1124, %v1170
        %v1172 = vsel %vm546, %v1133, %v1171
        %v1173 = vsel %vm548, %v1142, %v1172
        %v1174 = vsel %vm550, %v1151, %v1173
        %v1175 = vsel %vm552, %v1160, %v1174
        %1177 = vst.msk [vmem:[%s302] sm:$0xff] %vm431, %v1175
        %s1178 = sand.u32 %s155, 1
        %s1179 = scalar_lea.sflag [#allocation4], %s1178
        %s1180 = sand.u32 %s155, 1
        %s1181 = smul.addr %s1180, 8
        %s1182 = scalar_lea.vmem [#allocation5], %s1181
        %s1183 = sand.u32 %s181, 1
        %s1184 = scalar_lea.sflag [#allocation7], %s1183
        %s1185 = sand.u32 %s181, 1
        %s1186 = smul.addr %s1185, 8
        %s1187 = scalar_lea.vmem [#allocation6], %s1186
        // Predicated region
        $region45: #{tpu_custom_call.1} parent=39 // pred_check
          %p1188 = pneg %p165
        $region46: #{tpu_custom_call.1} parent=39 // pred_check_branch
          %1190 = sbr.rel (%p1188) target = $region48
        $region47: #{tpu_custom_call.1} parent=39 // pred_region
          %1192 = vsyncadd %s1179, 0
          %s1193 = smul.addr %s27, 8
          %s1194 = scalar_lea.hbm %s5, %s1193
          %s1196 = sshll.u32 %s1182, 4
          %s1197 = int_to_ptr.vmem [resolvable:$true] %s1196
          %s1198 = sshll.u32 %s1194, 4
          %s1199 = int_to_ptr.hbm [resolvable:$true] %s1198
          %1201 = dma.vmem_to_hbm [thread:$0]  %s1197, 128, %s1199, %s1179
        $region48: #{tpu_custom_call.1} parent=39 // pred_fallthru
          _
        // Predicated region
        $region49: #{tpu_custom_call.1} parent=39 // pred_check
          %p1202 = pneg %p191
        $region50: #{tpu_custom_call.1} parent=39 // pred_check_branch
          %1204 = sbr.rel (%p1202) target = $region52
        $region51: #{tpu_custom_call.1} parent=39 // pred_region
          %1206 = vsyncadd %s1184, 0
          %s1207 = smul.addr %s27, 8
          %s1208 = scalar_lea.hbm %s6, %s1207
          %s1210 = sshll.u32 %s1187, 4
          %s1211 = int_to_ptr.vmem [resolvable:$true] %s1210
          %s1212 = sshll.u32 %s1208, 4
          %s1213 = int_to_ptr.hbm [resolvable:$true] %s1212
          %1215 = dma.vmem_to_hbm [thread:$0]  %s1211, 128, %s1213, %s1184
        $region52: #{tpu_custom_call.1} parent=39 // pred_fallthru
          _
      $region40: #{tpu_custom_call.1} parent=5 // pred_fallthru
        _
      %p1216 = scmp.le.s32.totalorder 2, %s22
      // Predicated region
      $region53: #{tpu_custom_call.1} parent=5 // pred_check
        %p1217 = pneg %p1216
      $region54: #{tpu_custom_call.1} parent=5 // pred_check_branch
        %1219 = sbr.rel (%p1217) target = $region56
      $region55: #{tpu_custom_call.1} parent=5 // pred_region
        %s1220 = ssub.s32 %s22, 2
        // Predicated region
        $region57: #{tpu_custom_call.1} parent=55 // pred_check
          %p1221 = pneg %p171
        $region58: #{tpu_custom_call.1} parent=55 // pred_check_branch
          %1223 = sbr.rel (%p1221) target = $region60
        $region59: #{tpu_custom_call.1} parent=55 // pred_region
          %s1224 = sand.u32 %s156, 1
          %s1225 = scalar_lea.sflag [#allocation4], %s1224
          %s1226 = sand.u32 %s156, 1
          %s1227 = smul.addr %s1226, 8
          %s1228 = scalar_lea.vmem [#allocation5], %s1227
          %1230 = dma.done %s1225, 128
        $region60: #{tpu_custom_call.1} parent=55 // pred_fallthru
          _
        // Predicated region
        $region61: #{tpu_custom_call.1} parent=55 // pred_check
          %p1231 = pneg %p197
        $region62: #{tpu_custom_call.1} parent=55 // pred_check_branch
          %1233 = sbr.rel (%p1231) target = $region64
        $region63: #{tpu_custom_call.1} parent=55 // pred_region
          %s1234 = sand.u32 %s182, 1
          %s1235 = scalar_lea.sflag [#allocation7], %s1234
          %s1236 = sand.u32 %s182, 1
          %s1237 = smul.addr %s1236, 8
          %s1238 = scalar_lea.vmem [#allocation6], %s1237
          %1240 = dma.done %s1235, 128
        $region64: #{tpu_custom_call.1} parent=55 // pred_fallthru
          _
      $region56: #{tpu_custom_call.1} parent=5 // pred_fallthru
        _
    $region6: #{tpu_custom_call.1} parent=1 // loop_footer
      %s26 = sadd.s32 1, %s22
    $region7: #{tpu_custom_call.1} parent=1 // loop_footer_branch
      %21 = sbr.rel target = $region3
    $region8: #{tpu_custom_call.1} parent=1 // loop_exit
      _
    %1241 = vsyncpa [#allocation3], 1
    %s1242 = scalar_lea.sflag [#allocation3], 1
    %1243 = vsyncpa %s1242, 1
    %1244 = vsyncpa [#allocation4], 1
    %s1245 = scalar_lea.sflag [#allocation4], 1
    %1246 = vsyncpa %s1245, 1
    %1247 = vsyncpa [#allocation7], 1
    %s1248 = scalar_lea.sflag [#allocation7], 1
    %1249 = vsyncpa %s1248, 1

</llo_original>
